<compile_context>
chip_gen: v6e
topology: v6e:2x2x1
jax: 0.10.0
libtpu: 0.0.40
codegen_flags: <defaults>
</compile_context>

<pallas_src>
import jax
import jax.numpy as jnp
import numpy as np
from jax.experimental import pallas as pl
from jax.experimental.pallas import tpu as pltpu

EPS = 1e-6


# ----------------------------------------------------------------------------------
# Kernel
# ----------------------------------------------------------------------------------
def _make_gem_pool_classify_kernel(int_p):
    """Build the per-(batch-tile, seq-step) kernel body.

    int_p : statically-known integer GeM power (e.g. 3) -> pure VPU multiplies;
            None -> generic exp(p * log(x)) path using the prefetched scalar p.
    """

    def kernel(scal_ref, tbl_ref, cnt_ref, x_ref, mask_ref, invden_ref, w_ref, b_ref,
               o_ref, acc_ref):
        # scal_ref   : SMEM (2,)        f32  -- [p, 1/p]              (scalar prefetch)
        # tbl_ref    : SMEM [nb, ns]    i32  -- compacted seq-tile indices per batch tile
        # cnt_ref    : SMEM [nb]        i32  -- number of valid seq tiles per batch tile
        # x_ref      : VMEM [tB, tS, H] bf16 -- last_hidden_state tile
        # mask_ref   : VMEM [tB, tS]    f32  -- answer mask tile (lane-dense)
        # invden_ref : VMEM [tB, 1]     f32  -- 1 / clip(mask.sum(1), eps)
        # w_ref      : VMEM [H, Cp]     f32  -- header weight^T (C padded to 128 lanes)
        # b_ref      : VMEM [1, Cp]     f32  -- header bias (padded)
        # o_ref      : VMEM [tB, Cp]    f32  -- padded logits
        # acc_ref    : VMEM [tB, H]     f32  -- persistent pooled-sum accumulator
        i = pl.program_id(0)
        j = pl.program_id(1)

        @pl.when(j == 0)
        def _init():
            acc_ref[...] = jnp.zeros_like(acc_ref)

        @pl.when(j < cnt_ref[i])          # skip padded (answer-free) sequence steps
        def _accumulate():
            x = x_ref[...].astype(jnp.float32)            # bf16 stream -> f32 compute
            xc = jnp.clip(x, EPS)
            if int_p is not None:
                powered = xc                              # (clip(x))^p via VPU muls
                for _ in range(int_p - 1):
                    powered = powered * xc
            else:
                # generic p: exactly one log + one exp per element (EUP)
                powered = jnp.exp(scal_ref[0] * jnp.log(xc))
            mask = mask_ref[...]                          # [tB, tS] binary {0, 1}
            # (clip(x) * m)^p == clip(x)^p * m for binary m.  Fold the mask-apply and
            # the sequence reduction into tB tiny (1,tS)x(tS,H) MXU matmuls (the MXU is
            # otherwise idle in this mem-bound kernel) -- avoids any lane->sublane mask
            # relayout and keeps the VPU/XLU free.
            tB = mask.shape[0]
            for bb in range(tB):                          # static unroll, tB is small
                acc_ref[bb:bb + 1, :] += jnp.dot(
                    mask[bb:bb + 1, :], powered[bb],
                    preferred_element_type=jnp.float32)

        @pl.when(j == pl.num_programs(1) - 1)
        def _finalize():
            inv_p = (1.0 / float(int_p)) if int_p is not None else scal_ref[1]
            pooled = acc_ref[...] * invden_ref[...]       # [tB, H] * [tB, 1]
            # Guard pow(0, 1/p) for fully-masked rows (matches torch: result is 0).
            gem = jnp.where(
                pooled > 0.0,
                jnp.exp(inv_p * jnp.log(jnp.maximum(pooled, 1e-30))),
                0.0,
            )
            # Dropout(p=0.2) -- eval mode, identity.
            o_ref[...] = (
                jnp.dot(gem, w_ref[...], preferred_element_type=jnp.float32)
                + b_ref[...]
            )

    return kernel


# ----------------------------------------------------------------------------------
# Wrapper helpers
# ----------------------------------------------------------------------------------
def _round_up(x, m):
    return ((x + m - 1) // m) * m


def _device_vmem_profile():
    """(vmem_limit_bytes, per-buffer x-tile budget) tuned per TPU generation.

    The x input is double-buffered, so the effective x footprint is 2x the budget;
    mask / weights / accumulator are small and leave ample headroom below the limit.
    """
    kind = ""
    try:
        kind = jax.devices()[0].device_kind.lower()
    except Exception:
        pass
    if "v7" in kind:
        # v7x: 64 MiB VMEM per TensorCore -> stay comfortably under it.
        return 48 * 1024 * 1024, 8 * 1024 * 1024
    if "v5" in kind or "v6" in kind:
        # v5e/v6e: 128 MiB physical VMEM -> deep tiles for HBM DMA efficiency.
        return 64 * 1024 * 1024, 12 * 1024 * 1024
    return 48 * 1024 * 1024, 8 * 1024 * 1024


def _pick_batch_tile(B):
    """Prefer a multiple-of-8 batch tile with >= 2 blocks (v7x megacore); else full B."""
    for t in (8, 16, 32):
        if B % t == 0 and B // t >= 2:
            return t
    if B % 8 == 0:
        return 8
    return B


def _pick_seq_tile(S_pad, tB, H, itemsize, budget_bytes):
    """Largest seq tile dividing S_pad that (a) is a multiple of 8, (b) keeps the 2-D
    mask block lane-legal (multiple of 128 lanes, or the full sequence), and (c) fits
    the per-buffer x-tile VMEM budget.  Falls back to the smallest legal tile."""
    max_rows = max(8, budget_bytes // max(1, tB * H * itemsize))
    legal = [t for t in range(8, S_pad + 1, 8)
             if S_pad % t == 0 and (t % 128 == 0 or t == S_pad)]
    fitting = [t for t in legal if t <= max_rows]
    if fitting:
        return max(fitting)
    return min(legal)


# ----------------------------------------------------------------------------------
# Forward wrapper: masked GeM pooling + Linear header in one pallas_call
# ----------------------------------------------------------------------------------
def pool_and_classify(p, last_hidden_state, answer_attention_mask, w_t, b,
                      *, seq_tile=None, x_tile_budget_bytes=None,
                      vmem_limit_bytes=None):
    """GeM masked pooling over the sequence + Linear(H -> C) header.

    last_hidden_state     : [B, S, H] (any float dtype; streamed as bf16)
    answer_attention_mask : [B, S]    (binary)
    w_t                   : [H, C]    header weight transposed
    b                     : [1, C]    header bias
    returns               : [B, C]    float32 logits
    """
    B, S, H = last_hidden_state.shape
    C = w_t.shape[1]
    Cp = _round_up(C, 128)                                   # lane-dense output columns

    vmem_default, x_budget_default = _device_vmem_profile()
    if vmem_limit_bytes is None:
        vmem_limit_bytes = vmem_default
    if x_tile_budget_bytes is None:
        x_tile_budget_bytes = x_budget_default

    # bf16 streaming of the dominant activation read; f32 compute inside the kernel.
    x = last_hidden_state.astype(jnp.bfloat16)
    mask = answer_attention_mask.astype(jnp.float32)         # [B, S] lane-dense

    # Pad the sequence to a multiple of 8 (pads carry mask = 0 -> contribute nothing).
    S_pad = _round_up(S, 8)
    if S_pad != S:
        x = jnp.pad(x, ((0, 0), (0, S_pad - S), (0, 0)))
        mask = jnp.pad(mask, ((0, 0), (0, S_pad - S)))

    # Hoisted mask plumbing: 1 / clip(mask.sum(1), eps).
    inv_denom = 1.0 / jnp.clip(jnp.sum(mask, axis=1, keepdims=True), EPS)   # [B, 1]

    # Specialize the per-element power when p is a statically-known small integer
    # (inference: p is a frozen parameter, default 3) -> pure VPU multiplies, no EUP.
    p_arr = jnp.asarray(p, jnp.float32).reshape(-1)
    int_p = None
    try:
        pv = float(jax.device_get(p_arr[0]))
        if abs(pv - round(pv)) < 1e-6 and 1 <= int(round(pv)) <= 8:
            int_p = int(round(pv))
    except Exception:        # p is traced -> generic exp/log path inside the kernel
        int_p = None

    scal = jnp.stack([p_arr[0], 1.0 / p_arr[0]]).astype(jnp.float32)        # (2,) SMEM

    # Lane-dense padded header so the output store is an unmasked vst.
    w_pad = jnp.zeros((H, Cp), jnp.float32).at[:, :C].set(w_t.astype(jnp.float32))
    b_pad = jnp.zeros((1, Cp), jnp.float32).at[:, :C].set(
        jnp.asarray(b, jnp.float32).reshape(1, C))

    # Tiling.
    tB = _pick_batch_tile(B)
    if seq_tile is not None:
        tS = int(seq_tile)
        if S_pad % tS != 0 or tS % 8 != 0 or not (tS % 128 == 0 or tS == S_pad):
            raise ValueError(
                f"seq_tile={tS} must divide the padded sequence ({S_pad}), be a "
                f"multiple of 8, and be a multiple of 128 (or the full sequence).")
    else:
        tS = _pick_seq_tile(S_pad, tB, H, x.dtype.itemsize, x_tile_budget_bytes)
    nb, ns = B // tB, S_pad // tS

    # Skip table: for each batch tile, the seq-tile indices that contain answer tokens,
    # compacted to the front.  Padded entries repeat the last valid index so their
    # DMAs are elided (same block index as the previous step); compute is pl.when-gated.
    flags = mask.reshape(nb, tB, ns, tS).sum(axis=(1, 3)) > 0.0             # [nb, ns]
    counts = flags.sum(axis=1).astype(jnp.int32)                            # [nb]
    order = jnp.argsort(jnp.where(flags, 0, 1).astype(jnp.int32),
                        axis=1).astype(jnp.int32)                           # valid first
    last_valid = jnp.take_along_axis(order,
                                     jnp.maximum(counts - 1, 0)[:, None], axis=1)
    step_ids = jnp.arange(ns, dtype=jnp.int32)[None, :]
    tbl = jnp.where(step_ids < counts[:, None], order, last_valid)          # [nb, ns]

    kernel = _make_gem_pool_classify_kernel(int_p)

    out_padded = pl.pallas_call(
        kernel,
        out_shape=jax.ShapeDtypeStruct((B, Cp), jnp.float32),
        grid_spec=pltpu.PrefetchScalarGridSpec(
            num_scalar_prefetch=3,                # scal, tbl, counts -> SMEM
            grid=(nb, ns),
            in_specs=[
                pl.BlockSpec((tB, tS, H),
                             lambda i, j, scal, tbl, cnt: (i, tbl[i, j], 0)),   # x
                pl.BlockSpec((tB, tS),
                             lambda i, j, scal, tbl, cnt: (i, tbl[i, j])),      # mask
                pl.BlockSpec((tB, 1),
                             lambda i, j, scal, tbl, cnt: (i, 0)),              # 1/denom
                pl.BlockSpec((H, Cp),
                             lambda i, j, scal, tbl, cnt: (0, 0)),              # W^T
                pl.BlockSpec((1, Cp),
                             lambda i, j, scal, tbl, cnt: (0, 0)),              # bias
            ],
            out_specs=pl.BlockSpec((tB, Cp),
                                   lambda i, j, scal, tbl, cnt: (i, 0)),
            scratch_shapes=[pltpu.VMEM((tB, H), jnp.float32)],
        ),
        compiler_params=pltpu.CompilerParams(
            dimension_semantics=("parallel", "arbitrary"),
            vmem_limit_bytes=vmem_limit_bytes,
        ),
    )(scal, tbl, counts, x, mask, inv_denom, w_pad, b_pad)

    return out_padded[:, :C]


# ----------------------------------------------------------------------------------
# Module mirror
# ----------------------------------------------------------------------------------
class MyAwesomeClassifierJAX:
    """Parameter container + forward wrapper mirroring the PyTorch module."""

    def __init__(self, key, vocab_size, type_vocab_size, hidden_size, class_count):
        k_word, k_type, k_w, k_b = jax.random.split(key, 4)
        # synthetic backbone embeddings (stand-in for AutoModel)
        self.word_emb = jax.random.normal(k_word, (vocab_size, hidden_size),
                                          jnp.float32) * 0.02
        self.type_emb = jax.random.normal(k_type, (type_vocab_size, hidden_size),
                                          jnp.float32) * 0.02
        # MyAwesomePooler: p = ones(1) * 3
        self.p = jnp.ones((1,), jnp.float32) * 3.0
        # header: Linear(hidden_size, class_count, bias=True)
        bound = 1.0 / (hidden_size ** 0.5)
        w = jax.random.uniform(k_w, (class_count, hidden_size), jnp.float32,
                               -bound, bound)
        self.w_t = jnp.asarray(w.T)                           # [H, C]
        self.b = jax.random.uniform(k_b, (1, class_count), jnp.float32, -bound, bound)

    def backbone(self, input_ids, attention_mask, token_type_ids):
        # TODO(synk): replace with a real transformer encoder; attention_mask would be
        #             consumed inside the backbone.
        hidden = jnp.take(self.word_emb, input_ids, axis=0) + jnp.take(
            self.type_emb, token_type_ids, axis=0)
        hidden = hidden * attention_mask.astype(jnp.float32)[:, :, None]
        return hidden.astype(jnp.bfloat16)                    # backbones emit bf16

    def __call__(self, input_ids, attention_mask, token_type_ids,
                 answer_attention_mask, seq_tile=None):
        hidden = self.backbone(input_ids, attention_mask, token_type_ids)
        return pool_and_classify(
            self.p, hidden, answer_attention_mask.astype(jnp.float32),
            self.w_t, self.b, seq_tile=seq_tile,
        )


def reference_forward(p, hidden, mask, w_t, b):
    """Plain-JAX mirror of MyAwesomePooler + Dropout(eval) + Linear, for validation."""
    x = hidden.astype(jnp.float32)
    mask_e = jnp.broadcast_to(mask.astype(jnp.float32)[:, :, None], x.shape)
    pooled = jnp.sum(jnp.power(jnp.clip(x, EPS) * mask_e, p[0]), axis=1)
    denom = jnp.clip(jnp.sum(mask_e, axis=1), EPS)
    gem = jnp.power(pooled / denom, 1.0 / p[0])
    return jnp.dot(gem, w_t) + b


# ----------------------------------------------------------------------------------
# Demo / self-test
# ----------------------------------------------------------------------------------
if __name__ == "__main__":
    key = jax.random.PRNGKey(0)
    k_model, k_ids, k_mask = jax.random.split(key, 3)

    B, S, H, C = 2, 256, 32, 4
    VOCAB, TYPE_VOCAB = 64, 2

    model = MyAwesomeClassifierJAX(k_model, VOCAB, TYPE_VOCAB, H, C)

    input_ids = jax.random.randint(k_ids, (B, S), 0, VOCAB, dtype=jnp.int32)
    attention_mask = jnp.ones((B, S), jnp.int32)
    token_type_ids = jnp.zeros((B, S), jnp.int32)
    hidden = model.backbone(input_ids, attention_mask, token_type_ids)

    # Case 1: answer span = second half of the sequence.  seq_tile=128 -> grid (1, 2):
    # exercises init / tile-skip (first tile is answer-free) / accumulate / finalize.
    answer_mask_1 = jnp.broadcast_to(
        (jnp.arange(S)[None, :] >= S // 2).astype(jnp.int32), (B, S))
    logits_1 = model(input_ids, attention_mask, token_type_ids, answer_mask_1,
                     seq_tile=128)
    jax.block_until_ready(logits_1)
    assert logits_1.shape == (B, C) and logits_1.dtype == jnp.float32
    ref_1 = reference_forward(model.p, hidden, answer_mask_1, model.w_t, model.b)
    np.testing.assert_allclose(np.asarray(logits_1), np.asarray(ref_1),
                               rtol=2e-3, atol=2e-3)

    # Case 2: scattered answer mask with one fully-masked row (exercises the
    # zero-answer guard and the data-dependent skip table with auto tiling).
    answer_mask_2 = jax.random.bernoulli(k_mask, 0.3, (B, S)).astype(jnp.int32)
    answer_mask_2 = answer_mask_2.at[0, :].set(0)
    logits_2 = model(input_ids, attention_mask, token_type_ids, answer_mask_2)
    jax.block_until_ready(logits_2)
    ref_2 = reference_forward(model.p, hidden, answer_mask_2, model.w_t, model.b)
    np.testing.assert_allclose(np.asarray(logits_2), np.asarray(ref_2),
                               rtol=2e-3, atol=2e-3)

    # Case 3: non-integer p -> generic exp/log kernel path.
    p_frac = jnp.asarray([2.5], jnp.float32)
    logits_3 = pool_and_classify(p_frac, hidden, answer_mask_1.astype(jnp.float32),
                                 model.w_t, model.b, seq_tile=128)
    jax.block_until_ready(logits_3)
    ref_3 = reference_forward(p_frac, hidden, answer_mask_1, model.w_t, model.b)
    np.testing.assert_allclose(np.asarray(logits_3), np.asarray(ref_3),
                               rtol=2e-3, atol=2e-3)

    print("KERNEL_OK")
</pallas_src>

<mosaic_0001>
module attributes {stable_mosaic.version = 11 : i64} {
  func.func @kernel(%arg0: i32, %arg1: i32, %arg2: memref<2xf32, #tpu.memory_space<smem>>, %arg3: memref<1x2xi32, #tpu.memory_space<smem>>, %arg4: memref<1xi32, #tpu.memory_space<smem>>, %arg5: memref<2x128x32xbf16, #tpu.memory_space<vmem>>, %arg6: memref<2x128xf32, #tpu.memory_space<vmem>>, %arg7: memref<2x1xf32, #tpu.memory_space<vmem>>, %arg8: memref<32x128xf32, #tpu.memory_space<vmem>>, %arg9: memref<1x128xf32, #tpu.memory_space<vmem>>, %arg10: memref<2x128xf32, #tpu.memory_space<vmem>>, %arg11: memref<2x32xf32, #tpu.memory_space<vmem>>) attributes {dimension_semantics = [#tpu.dimension_semantics<parallel>, #tpu.dimension_semantics<arbitrary>], iteration_bounds = array<i64: 1, 2>, scalar_prefetch = 3 : i64, scratch_operands = 1 : i64, tpu.core_type = #tpu.core_type<tc>, window_params = [{transform_indices = @transform_0, window_bounds = array<i64: 2, 128, 32>}, {transform_indices = @transform_1, window_bounds = array<i64: 2, 128>}, {transform_indices = @transform_2, window_bounds = array<i64: 2, 1>}, {pipeline_mode = #tpu.pipeline_mode<synchronous>, transform_indices = @transform_3, window_bounds = array<i64: 32, 128>}, {pipeline_mode = #tpu.pipeline_mode<synchronous>, transform_indices = @transform_4, window_bounds = array<i64: 1, 128>}, {transform_indices = @transform_5, window_bounds = array<i64: 2, 128>}]} {
    %c0_i32 = arith.constant 0 : i32
    %0 = arith.cmpi eq, %arg1, %c0_i32 : i32
    %1 = arith.extui %0 : i1 to i32
    %c0_i32_0 = arith.constant 0 : i32
    %2 = arith.cmpi ne, %1, %c0_i32_0 : i32
    scf.if %2 {
      %cst = arith.constant 0.000000e+00 : f32
      %11 = vector.broadcast %cst : f32 to vector<2x32xf32>
      %c0 = arith.constant 0 : index
      %c0_3 = arith.constant 0 : index
      %12 = vector.load %arg11[%c0, %c0_3] : memref<2x32xf32, #tpu.memory_space<vmem>>, vector<2x32xf32>
      tpu.vector_store %arg11[%c0, %c0_3], %11 {strides = array<i32>} : memref<2x32xf32, #tpu.memory_space<vmem>>, vector<2x32xf32>,
    } else {
    }
    %3 = arith.index_cast %arg0 : i32 to index
    %4 = memref.load %arg4[%3] : memref<1xi32, #tpu.memory_space<smem>>
    %5 = arith.cmpi slt, %arg1, %4 : i32
    %6 = arith.extui %5 : i1 to i32
    %c0_i32_1 = arith.constant 0 : i32
    %7 = arith.cmpi ne, %6, %c0_i32_1 : i32
    scf.if %7 {
      %c0 = arith.constant 0 : index
      %c0_3 = arith.constant 0 : index
      %c0_4 = arith.constant 0 : index
      %11 = vector.load %arg5[%c0, %c0_3, %c0_4] : memref<2x128x32xbf16, #tpu.memory_space<vmem>>, vector<2x128x32xbf16>
      %12 = arith.extf %11 : vector<2x128x32xbf16> to vector<2x128x32xf32>
      %cst = arith.constant 9.99999997E-7 : f32
      %13 = vector.broadcast %cst : f32 to vector<2x128x32xf32>
      %14 = arith.maximumf %13, %12 : vector<2x128x32xf32>
      %15 = arith.mulf %14, %14 : vector<2x128x32xf32>
      %16 = arith.mulf %15, %14 : vector<2x128x32xf32>
      %c0_5 = arith.constant 0 : index
      %c0_6 = arith.constant 0 : index
      %17 = vector.load %arg6[%c0_5, %c0_6] : memref<2x128xf32, #tpu.memory_space<vmem>>, vector<2x128xf32>
      %c0_7 = arith.constant 0 : index
      %c0_8 = arith.constant 0 : index
      %18 = vector.load %arg11[%c0_7, %c0_8] : memref<2x32xf32, #tpu.memory_space<vmem>>, vector<1x32xf32>
      %19 = vector.extract_strided_slice %17 {offsets = [0, 0], sizes = [1, 128], strides = [1, 1]} : vector<2x128xf32> to vector<1x128xf32>
      %20 = vector.extract_strided_slice %16 {offsets = [0, 0, 0], sizes = [1, 128, 32], strides = [1, 1, 1]} : vector<2x128x32xf32> to vector<1x128x32xf32>
      %21 = vector.shape_cast %20 : vector<1x128x32xf32> to vector<128x32xf32>
      %cst_9 = arith.constant dense<0.000000e+00> : vector<1x32xf32>
      %22 = tpu.matmul %19, %21, %cst_9 {dimension_numbers = #tpu.dot_dimension_numbers<[1], [0], [0], [1], [0, 0, 1, 1], [], []>} : vector<1x128xf32>, vector<128x32xf32>, vector<1x32xf32> -> vector<1x32xf32>
      %23 = arith.addf %18, %22 : vector<1x32xf32>
      %c0_10 = arith.constant 0 : index
      %c0_11 = arith.constant 0 : index
      %24 = vector.load %arg11[%c0_10, %c0_11] : memref<2x32xf32, #tpu.memory_space<vmem>>, vector<1x32xf32>
      tpu.vector_store %arg11[%c0_10, %c0_11], %23 {strides = array<i32>} : memref<2x32xf32, #tpu.memory_space<vmem>>, vector<1x32xf32>,
      %c1 = arith.constant 1 : index
      %c0_12 = arith.constant 0 : index
      %25 = vector.load %arg11[%c1, %c0_12] : memref<2x32xf32, #tpu.memory_space<vmem>>, vector<1x32xf32>
      %26 = vector.extract_strided_slice %17 {offsets = [1, 0], sizes = [1, 128], strides = [1, 1]} : vector<2x128xf32> to vector<1x128xf32>
      %27 = vector.extract_strided_slice %16 {offsets = [1, 0, 0], sizes = [1, 128, 32], strides = [1, 1, 1]} : vector<2x128x32xf32> to vector<1x128x32xf32>
      %28 = vector.shape_cast %27 : vector<1x128x32xf32> to vector<128x32xf32>
      %cst_13 = arith.constant dense<0.000000e+00> : vector<1x32xf32>
      %29 = tpu.matmul %26, %28, %cst_13 {dimension_numbers = #tpu.dot_dimension_numbers<[1], [0], [0], [1], [0, 0, 1, 1], [], []>} : vector<1x128xf32>, vector<128x32xf32>, vector<1x32xf32> -> vector<1x32xf32>
      %30 = arith.addf %25, %29 : vector<1x32xf32>
      %c1_14 = arith.constant 1 : index
      %c0_15 = arith.constant 0 : index
      %31 = vector.load %arg11[%c1_14, %c0_15] : memref<2x32xf32, #tpu.memory_space<vmem>>, vector<1x32xf32>
      tpu.vector_store %arg11[%c1_14, %c0_15], %30 {strides = array<i32>} : memref<2x32xf32, #tpu.memory_space<vmem>>, vector<1x32xf32>,
    } else {
    }
    %c1_i32 = arith.constant 1 : i32
    %8 = arith.cmpi eq, %arg1, %c1_i32 : i32
    %9 = arith.extui %8 : i1 to i32
    %c0_i32_2 = arith.constant 0 : i32
    %10 = arith.cmpi ne, %9, %c0_i32_2 : i32
    scf.if %10 {
      %c0 = arith.constant 0 : index
      %c0_3 = arith.constant 0 : index
      %11 = vector.load %arg11[%c0, %c0_3] : memref<2x32xf32, #tpu.memory_space<vmem>>, vector<2x32xf32>
      %c0_4 = arith.constant 0 : index
      %c0_5 = arith.constant 0 : index
      %12 = vector.load %arg7[%c0_4, %c0_5] : memref<2x1xf32, #tpu.memory_space<vmem>>, vector<2x1xf32>
      %13 = vector.broadcast %12 : vector<2x1xf32> to vector<2x32xf32>
      %14 = arith.mulf %11, %13 : vector<2x32xf32>
      %cst = arith.constant 0.000000e+00 : f32
      %15 = vector.broadcast %cst : f32 to vector<2x32xf32>
      %16 = arith.cmpf ogt, %14, %15 : vector<2x32xf32>
      %cst_6 = arith.constant 1.000000e-30 : f32
      %17 = vector.broadcast %cst_6 : f32 to vector<2x32xf32>
      %18 = arith.maximumf %14, %17 : vector<2x32xf32>
      %19 = math.log %18 : vector<2x32xf32>
      %cst_7 = arith.constant 0.333333343 : f32
      %20 = vector.broadcast %cst_7 : f32 to vector<2x32xf32>
      %21 = arith.mulf %20, %19 : vector<2x32xf32>
      %22 = math.exp %21 : vector<2x32xf32>
      %cst_8 = arith.constant 0.000000e+00 : f32
      %23 = vector.broadcast %cst_8 : f32 to vector<2x32xf32>
      %24 = arith.select %16, %22, %23 : vector<2x32xi1>, vector<2x32xf32>
      %c0_9 = arith.constant 0 : index
      %c0_10 = arith.constant 0 : index
      %25 = vector.load %arg8[%c0_9, %c0_10] : memref<32x128xf32, #tpu.memory_space<vmem>>, vector<32x128xf32>
      %cst_11 = arith.constant dense<0.000000e+00> : vector<2x128xf32>
      %26 = tpu.matmul %24, %25, %cst_11 {dimension_numbers = #tpu.dot_dimension_numbers<[1], [0], [0], [1], [0, 0, 1, 1], [], []>} : vector<2x32xf32>, vector<32x128xf32>, vector<2x128xf32> -> vector<2x128xf32>
      %c0_12 = arith.constant 0 : index
      %c0_13 = arith.constant 0 : index
      %27 = vector.load %arg9[%c0_12, %c0_13] : memref<1x128xf32, #tpu.memory_space<vmem>>, vector<1x128xf32>
      %28 = vector.broadcast %27 : vector<1x128xf32> to vector<2x128xf32>
      %29 = arith.addf %26, %28 : vector<2x128xf32>
      %c0_14 = arith.constant 0 : index
      %c0_15 = arith.constant 0 : index
      %30 = vector.load %arg10[%c0_14, %c0_15] : memref<2x128xf32, #tpu.memory_space<vmem>>, vector<2x128xf32>
      tpu.vector_store %arg10[%c0_14, %c0_15], %29 {strides = array<i32>} : memref<2x128xf32, #tpu.memory_space<vmem>>, vector<2x128xf32>,
    } else {
    }
    return
  }
  func.func @transform_0(%arg0: i32, %arg1: i32, %arg2: memref<2xf32, #tpu.memory_space<smem>>, %arg3: memref<1x2xi32, #tpu.memory_space<smem>>, %arg4: memref<1xi32, #tpu.memory_space<smem>>) -> (i32, i32, i32) {
    %0 = arith.index_cast %arg0 : i32 to index
    %1 = arith.index_cast %arg1 : i32 to index
    %2 = memref.load %arg3[%0, %1] : memref<1x2xi32, #tpu.memory_space<smem>>
    %c0_i32 = arith.constant 0 : i32
    %c0_i32_0 = arith.constant 0 : i32
    return %arg0, %2, %c0_i32 : i32, i32, i32
  }
  func.func @transform_1(%arg0: i32, %arg1: i32, %arg2: memref<2xf32, #tpu.memory_space<smem>>, %arg3: memref<1x2xi32, #tpu.memory_space<smem>>, %arg4: memref<1xi32, #tpu.memory_space<smem>>) -> (i32, i32) {
    %0 = arith.index_cast %arg0 : i32 to index
    %1 = arith.index_cast %arg1 : i32 to index
    %2 = memref.load %arg3[%0, %1] : memref<1x2xi32, #tpu.memory_space<smem>>
    %c0_i32 = arith.constant 0 : i32
    return %arg0, %2 : i32, i32
  }
  func.func @transform_2(%arg0: i32, %arg1: i32, %arg2: memref<2xf32, #tpu.memory_space<smem>>, %arg3: memref<1x2xi32, #tpu.memory_space<smem>>, %arg4: memref<1xi32, #tpu.memory_space<smem>>) -> (i32, i32) {
    %c0_i32 = arith.constant 0 : i32
    %c0_i32_0 = arith.constant 0 : i32
    return %arg0, %c0_i32 : i32, i32
  }
  func.func @transform_3(%arg0: i32, %arg1: i32, %arg2: memref<2xf32, #tpu.memory_space<smem>>, %arg3: memref<1x2xi32, #tpu.memory_space<smem>>, %arg4: memref<1xi32, #tpu.memory_space<smem>>) -> (i32, i32) {
    %c0_i32 = arith.constant 0 : i32
    %c0_i32_0 = arith.constant 0 : i32
    %c0_i32_1 = arith.constant 0 : i32
    return %c0_i32, %c0_i32_0 : i32, i32
  }
  func.func @transform_4(%arg0: i32, %arg1: i32, %arg2: memref<2xf32, #tpu.memory_space<smem>>, %arg3: memref<1x2xi32, #tpu.memory_space<smem>>, %arg4: memref<1xi32, #tpu.memory_space<smem>>) -> (i32, i32) {
    %c0_i32 = arith.constant 0 : i32
    %c0_i32_0 = arith.constant 0 : i32
    %c0_i32_1 = arith.constant 0 : i32
    return %c0_i32, %c0_i32_0 : i32, i32
  }
  func.func @transform_5(%arg0: i32, %arg1: i32, %arg2: memref<2xf32, #tpu.memory_space<smem>>, %arg3: memref<1x2xi32, #tpu.memory_space<smem>>, %arg4: memref<1xi32, #tpu.memory_space<smem>>) -> (i32, i32) {
    %c0_i32 = arith.constant 0 : i32
    %c0_i32_0 = arith.constant 0 : i32
    return %arg0, %c0_i32 : i32, i32
  }
}

</mosaic_0001>

<llo_original>
// kernel: tpu_custom_call.1
$region0: #{tpu_custom_call.1}
  #allocation0 [shape = 'u32[]', space=smem, size = 0x4, offset = 0x4, fixed_abs, tag = 'smem constant byte address 0x4 - core index']
  #allocation1 [shape = 'u32[144,128]{1,0:T(1,128)}', space=vmem, size = 0x12000, scoped, tag = 'internal scratch']
  #allocation2 [shape = 'f32[2,32]{1,0:T(2,128)}', space=vmem, size = 0x400, scoped, tag = 'scratch operand']
  #allocation3 [shape = 's32[1]{0}', space=sflag, size = 0x4, scoped, tag = 'scoped memory for tpu_custom_call.1']
  #allocation4 [shape = 'u8[512]{0}', space=smem, size = 0x200, scoped, tag = 'prefetched SMEM operand 0']
  #allocation5 [shape = 'u8[512]{0}', space=smem, size = 0x200, scoped, tag = 'prefetched SMEM operand 1']
  #allocation6 [shape = 's32[1]{0:T(128)S(6)}', space=smem, size = 0x200, scoped, tag = 'prefetched SMEM operand 2']
  %s0 = inlined_call_operand.vmem [shape: f32[2], index: 0, kind: input, shape index: {}]
  %s1 = inlined_call_operand.vmem [shape: s32[1,2], index: 1, kind: input, shape index: {}]
  %s2 = inlined_call_operand.<no memory space> [shape: s32[1], index: 2, kind: input, shape index: {}]
  %s3 = inlined_call_operand.vmem [shape: bf16[2,256,32], index: 3, kind: input, shape index: {}]
  %s4 = inlined_call_operand.vmem [shape: f32[2,256], index: 4, kind: input, shape index: {}]
  %s5 = inlined_call_operand.vmem [shape: f32[2,1], index: 5, kind: input, shape index: {}]
  %s6 = inlined_call_operand.vmem [shape: f32[32,128], index: 6, kind: input, shape index: {}]
  %s7 = inlined_call_operand.vmem [shape: f32[1,128], index: 7, kind: input, shape index: {}]
  %s8 = inlined_call_operand.hbm [shape: f32[2,128], index: 8, kind: output, shape index: {}]
  %s9 = sld [smem:[#allocation0]]
  $region106: #{tpu_custom_call.1} parent=0
    _
  %s11 = ssub.s32 1, %s9
  %s12 = scalar_select 0, %s11, %s9
  %s13 = sshll.u32 %s0, 4
  %s14 = int_to_ptr.vmem [resolvable:$true] %s13
  %16 = dma.vmem_to_smem %s14, 16, [#allocation4], [#allocation3]
  %s17 = sshll.u32 %s1, 4
  %s18 = int_to_ptr.vmem [resolvable:$true] %s17
  %20 = dma.vmem_to_smem %s18, 16, [#allocation5], [#allocation3]
  %21 = sst [smem:[#allocation6]] %s2
  %22 = dma.done [#allocation3], 32
  %23 = sfence
  $region1: #{tpu_custom_call.1} parent=0
    #allocation7 [shape = 'u8[131072]{0}', space=vmem, size = 0x20000, scoped, tag = 'input window, operand 3']
    #allocation8 [shape = 'u8[1024]{0}', space=vmem, size = 0x400, scoped, tag = 'output window, operand 0, single buffered']
    #allocation9 [shape = 's32[2]{0}', space=sflag, size = 0x8, scoped, tag = 'scoped memory for tpu_custom_call.1']
    %24 = vsyncpa [#allocation9], 0
    loop: start=0, step=1, limit=4
    $region2: #{tpu_custom_call.1} parent=1 // loop_pre_header
      _
    $region3: #{tpu_custom_call.1} parent=1 // loop_header
      %s26 = sphi 0, %s30
      %p27 = scmp.ge.s32.totalorder %s26, 4
      %s33 = sphi 0, %s45
      %s34 = sphi 0, %s41
      %s35 = sphi 0, %s33
      %s36 = sphi 0, %s34
      %s37 = sphi 0, %s35
      %s38 = sphi 0, %s36
      %s66 = sphi 0, %s68
      %s69 = sphi 0, %s66
      %s70 = sphi 0, %s69
      %s86 = sphi 0, %s70
      %s110 = sphi 0, %s112
      %s113 = sphi 0, %s110
      %s114 = sphi 0, %s113
      %s130 = sphi 0, %s114
      %s136 = sphi 0, %s138
      %s139 = sphi 0, %s136
      %s140 = sphi 0, %s139
      %s156 = sphi 0, %s140
      %s160 = sphi 0, %s160
      %s162 = sphi 0, %s160
      %s163 = sphi 0, %s162
      %s177 = sphi 0, %s163
      %s181 = sphi 0, %s181
      %s183 = sphi 0, %s181
      %s184 = sphi 0, %s183
      %s198 = sphi 0, %s184
      %s204 = sphi 0, %s206
      %s207 = sphi 0, %s204
      %s208 = sphi 0, %s207
      %s224 = sphi 0, %s208
    $region4: #{tpu_custom_call.1} parent=1 // loop_header_branch
      %29 = sbr.rel (%p27) target = $region8
    $region5: #{tpu_custom_call.1} parent=1 // loop_body
      %s31 = ssub.s32 %s26, 1
      %s32 = ssub.s32 %s26, 2
      %s39 = sadd.s32 1, %s34
      %p40 = scmp.ge.s32.totalorder %s39, 2
      %s41 = scalar_select %p40, 0, %s39
      %s42 = sadd.s32 1, %s33
      %s43 = scalar_select %p40, %s42, %s33
      %p44 = scmp.ge.s32.totalorder %s43, 1
      %s45 = scalar_select %p44, 0, %s43
      %s46 = sshra.s32 %s34, 7
      %s47 = sand.u32 %s34, 127
      %s48 = sadd.s32 %s46, %s33
      %s49 = smul.u32 %s48, 128
      %s50 = sshra.s32 %s34, 7
      %s51 = sand.u32 %s34, 127
      %s52 = sadd.s32 %s49, %s51
      %s53 = sld [smem:[#allocation5 + %s52]]
      %s54 = sshra.s32 %s41, 7
      %s55 = sand.u32 %s41, 127
      %s56 = sadd.s32 %s54, %s45
      %s57 = smul.u32 %s56, 128
      %s58 = sshra.s32 %s41, 7
      %s59 = sand.u32 %s41, 127
      %s60 = sadd.s32 %s57, %s59
      %s61 = sld [smem:[#allocation5 + %s60]]
      %s62 = ssub.s32 %s33, %s45
      %s63 = ssub.s32 %s53, %s61
      %s64 = sor.u32 %s62, %s63
      %p65 = scmp.eq.s32.totalorder %s64, 0
      %s67 = sadd.s32 %s66, 1
      %s68 = scalar_select %p65, %s66, %s67
      %p71 = pneg %p65
      %p72 = scmp.eq.s32.totalorder %s26, 1
      %p73 = por %p71, %p72
      %p74 = scmp.ne.s32.totalorder %s66, %s69
      %p75 = scmp.eq.s32.totalorder %s26, 0
      %p76 = por %p74, %p75
      %p77 = scmp.ne.s32.totalorder %s66, %s69
      %p78 = scmp.eq.s32.totalorder %s31, 1
      %p79 = por %p77, %p78
      %p80 = scmp.ne.s32.totalorder %s69, %s70
      %p81 = scmp.eq.s32.totalorder %s31, 0
      %p82 = por %p80, %p81
      %p83 = scmp.ne.s32.totalorder %s69, %s70
      %p84 = scmp.eq.s32.totalorder %s32, 1
      %p85 = por %p83, %p84
      %p87 = scmp.ne.s32.totalorder %s70, %s86
      %p88 = scmp.eq.s32.totalorder %s32, 0
      %p89 = por %p87, %p88
      %s90 = sshra.s32 %s34, 7
      %s91 = sand.u32 %s34, 127
      %s92 = sadd.s32 %s90, %s33
      %s93 = smul.u32 %s92, 128
      %s94 = sshra.s32 %s34, 7
      %s95 = sand.u32 %s34, 127
      %s96 = sadd.s32 %s93, %s95
      %s97 = sld [smem:[#allocation5 + %s96]]
      %s98 = sshra.s32 %s41, 7
      %s99 = sand.u32 %s41, 127
      %s100 = sadd.s32 %s98, %s45
      %s101 = smul.u32 %s100, 128
      %s102 = sshra.s32 %s41, 7
      %s103 = sand.u32 %s41, 127
      %s104 = sadd.s32 %s101, %s103
      %s105 = sld [smem:[#allocation5 + %s104]]
      %s106 = ssub.s32 %s33, %s45
      %s107 = ssub.s32 %s97, %s105
      %s108 = sor.u32 %s106, %s107
      %p109 = scmp.eq.s32.totalorder %s108, 0
      %s111 = sadd.s32 %s110, 1
      %s112 = scalar_select %p109, %s110, %s111
      %p115 = pneg %p109
      %p116 = scmp.eq.s32.totalorder %s26, 1
      %p117 = por %p115, %p116
      %p118 = scmp.ne.s32.totalorder %s110, %s113
      %p119 = scmp.eq.s32.totalorder %s26, 0
      %p120 = por %p118, %p119
      %p121 = scmp.ne.s32.totalorder %s110, %s113
      %p122 = scmp.eq.s32.totalorder %s31, 1
      %p123 = por %p121, %p122
      %p124 = scmp.ne.s32.totalorder %s113, %s114
      %p125 = scmp.eq.s32.totalorder %s31, 0
      %p126 = por %p124, %p125
      %p127 = scmp.ne.s32.totalorder %s113, %s114
      %p128 = scmp.eq.s32.totalorder %s32, 1
      %p129 = por %p127, %p128
      %p131 = scmp.ne.s32.totalorder %s114, %s130
      %p132 = scmp.eq.s32.totalorder %s32, 0
      %p133 = por %p131, %p132
      %s134 = ssub.s32 %s33, %s45
      %p135 = scmp.eq.s32.totalorder %s134, 0
      %s137 = sadd.s32 %s136, 1
      %s138 = scalar_select %p135, %s136, %s137
      %p141 = pneg %p135
      %p142 = scmp.eq.s32.totalorder %s26, 1
      %p143 = por %p141, %p142
      %p144 = scmp.ne.s32.totalorder %s136, %s139
      %p145 = scmp.eq.s32.totalorder %s26, 0
      %p146 = por %p144, %p145
      %p147 = scmp.ne.s32.totalorder %s136, %s139
      %p148 = scmp.eq.s32.totalorder %s31, 1
      %p149 = por %p147, %p148
      %p150 = scmp.ne.s32.totalorder %s139, %s140
      %p151 = scmp.eq.s32.totalorder %s31, 0
      %p152 = por %p150, %p151
      %p153 = scmp.ne.s32.totalorder %s139, %s140
      %p154 = scmp.eq.s32.totalorder %s32, 1
      %p155 = por %p153, %p154
      %p157 = scmp.ne.s32.totalorder %s140, %s156
      %p158 = scmp.eq.s32.totalorder %s32, 0
      %p159 = por %p157, %p158
      %s161 = sadd.s32 %s160, 1
      %p164 = scmp.eq.s32.totalorder %s26, 1
      %p165 = scmp.ne.s32.totalorder %s160, %s162
      %p166 = scmp.eq.s32.totalorder %s26, 0
      %p167 = por %p165, %p166
      %p168 = scmp.ne.s32.totalorder %s160, %s162
      %p169 = scmp.eq.s32.totalorder %s31, 1
      %p170 = por %p168, %p169
      %p171 = scmp.ne.s32.totalorder %s162, %s163
      %p172 = scmp.eq.s32.totalorder %s31, 0
      %p173 = por %p171, %p172
      %p174 = scmp.ne.s32.totalorder %s162, %s163
      %p175 = scmp.eq.s32.totalorder %s32, 1
      %p176 = por %p174, %p175
      %p178 = scmp.ne.s32.totalorder %s163, %s177
      %p179 = scmp.eq.s32.totalorder %s32, 0
      %p180 = por %p178, %p179
      %s182 = sadd.s32 %s181, 1
      %p185 = scmp.eq.s32.totalorder %s26, 1
      %p186 = scmp.ne.s32.totalorder %s181, %s183
      %p187 = scmp.eq.s32.totalorder %s26, 0
      %p188 = por %p186, %p187
      %p189 = scmp.ne.s32.totalorder %s181, %s183
      %p190 = scmp.eq.s32.totalorder %s31, 1
      %p191 = por %p189, %p190
      %p192 = scmp.ne.s32.totalorder %s183, %s184
      %p193 = scmp.eq.s32.totalorder %s31, 0
      %p194 = por %p192, %p193
      %p195 = scmp.ne.s32.totalorder %s183, %s184
      %p196 = scmp.eq.s32.totalorder %s32, 1
      %p197 = por %p195, %p196
      %p199 = scmp.ne.s32.totalorder %s184, %s198
      %p200 = scmp.eq.s32.totalorder %s32, 0
      %p201 = por %p199, %p200
      %s202 = ssub.s32 %s33, %s45
      %p203 = scmp.eq.s32.totalorder %s202, 0
      %s205 = sadd.s32 %s204, 1
      %s206 = scalar_select %p203, %s204, %s205
      %p209 = pneg %p203
      %p210 = scmp.eq.s32.totalorder %s26, 1
      %p211 = por %p209, %p210
      %p212 = scmp.ne.s32.totalorder %s204, %s207
      %p213 = scmp.eq.s32.totalorder %s26, 0
      %p214 = por %p212, %p213
      %p215 = scmp.ne.s32.totalorder %s204, %s207
      %p216 = scmp.eq.s32.totalorder %s31, 1
      %p217 = por %p215, %p216
      %p218 = scmp.ne.s32.totalorder %s207, %s208
      %p219 = scmp.eq.s32.totalorder %s31, 0
      %p220 = por %p218, %p219
      %p221 = scmp.ne.s32.totalorder %s207, %s208
      %p222 = scmp.eq.s32.totalorder %s32, 1
      %p223 = por %p221, %p222
      %p225 = scmp.ne.s32.totalorder %s208, %s224
      %p226 = scmp.eq.s32.totalorder %s32, 0
      %p227 = por %p225, %p226
      %p228 = scmp.le.s32.totalorder 1, %s26
      %p229 = scmp.lt.s32.totalorder %s26, 3
      %p230 = pnand %p228, %p229
      %p231 = pneg %p230
      // Predicated region
      $region9: #{tpu_custom_call.1} parent=5 // pred_check
        _
      $region10: #{tpu_custom_call.1} parent=5 // pred_check_branch
        %233 = sbr.rel (%p230) target = $region12
      $region11: #{tpu_custom_call.1} parent=5 // pred_region
        %s234 = ssub.s32 %s26, 1
        // Predicated region
        $region13: #{tpu_custom_call.1} parent=11 // pred_check
          %p235 = pneg %p152
        $region14: #{tpu_custom_call.1} parent=11 // pred_check_branch
          %237 = sbr.rel (%p235) target = $region16
        $region15: #{tpu_custom_call.1} parent=11 // pred_region
          %p238 = scmp.lt.s32.totalorder %s35, 0
          %s239 = scalar_select %p238, %s35, 0
          %s240 = smul.addr %s239, 2
          %s241 = scalar_lea.vmem %s5, %s240
        $region16: #{tpu_custom_call.1} parent=11 // pred_fallthru
          _
        // Predicated region
        $region17: #{tpu_custom_call.1} parent=11 // pred_check
          %p242 = pneg %p173
        $region18: #{tpu_custom_call.1} parent=11 // pred_check_branch
          %244 = sbr.rel (%p242) target = $region20
        $region19: #{tpu_custom_call.1} parent=11 // pred_region
          _
        $region20: #{tpu_custom_call.1} parent=11 // pred_fallthru
          _
        // Predicated region
        $region21: #{tpu_custom_call.1} parent=11 // pred_check
          %p245 = pneg %p194
        $region22: #{tpu_custom_call.1} parent=11 // pred_check_branch
          %247 = sbr.rel (%p245) target = $region24
        $region23: #{tpu_custom_call.1} parent=11 // pred_region
          _
        $region24: #{tpu_custom_call.1} parent=11 // pred_fallthru
          _
      $region12: #{tpu_custom_call.1} parent=5 // pred_fallthru
        _
      %p248 = scmp.lt.s32.totalorder %s26, 2
      // Predicated region
      $region25: #{tpu_custom_call.1} parent=5 // pred_check
        %p249 = pneg %p248
      $region26: #{tpu_custom_call.1} parent=5 // pred_check_branch
        %251 = sbr.rel (%p249) target = $region28
      $region27: #{tpu_custom_call.1} parent=5 // pred_region
        // Predicated region
        $region29: #{tpu_custom_call.1} parent=27 // pred_check
          %p252 = pneg %p76
        $region30: #{tpu_custom_call.1} parent=27 // pred_check_branch
          %254 = sbr.rel (%p252) target = $region32
        $region31: #{tpu_custom_call.1} parent=27 // pred_region
          %s255 = sand.u32 %s66, 1
          %s256 = sand.u32 %s66, 1
          %s257 = smul.addr %s256, 128
          %s258 = scalar_lea.vmem [#allocation7], %s257
          %s259 = sshra.s32 %s34, 7
          %s260 = sand.u32 %s34, 127
          %s261 = sadd.s32 %s259, %s33
          %s262 = smul.u32 %s261, 128
          %s263 = sshra.s32 %s34, 7
          %s264 = sand.u32 %s34, 127
          %s265 = sadd.s32 %s262, %s264
          %s266 = sld [smem:[#allocation5 + %s265]]
          %s267 = smul.u32 2, %s33
          %s268 = smul.u32 16, %s266
          %s269 = smul.addr %s267, 32
          %s270 = sadd.s32 %s268, %s269
          %s271 = smul.addr %s270, 4
          %s272 = scalar_lea.vmem %s3, %s271
          // Predicated region
          $region33: #{tpu_custom_call.1} parent=31 // pred_check
            _
          $region34: #{tpu_custom_call.1} parent=31 // pred_check_branch
            %274 = sbr.rel (0) target = $region36
          $region35: #{tpu_custom_call.1} parent=31 // pred_region
            // Predicated region
            $region37: #{tpu_custom_call.1} parent=35 // pred_check
              _
            $region38: #{tpu_custom_call.1} parent=35 // pred_check_branch
              %276 = sbr.rel target = $region40
            $region39: #{tpu_custom_call.1} parent=35 // pred_region
              // Predicated region
              $region52: #{tpu_custom_call.1} parent=39 // pred_check
                _
              $region53: #{tpu_custom_call.1} parent=39 // pred_check_branch
                %354 = sbr.rel (0) target = $region55
              $region54: #{tpu_custom_call.1} parent=39 // pred_region
                loop: start=0, step=1, limit=1
                $region56: #{tpu_custom_call.1} parent=54 // loop_pre_header
                  _
                $region57: #{tpu_custom_call.1} parent=54 // loop_header
                  %s356 = sphi 0, %s360
                  %p357 = scmp.ge.s32.totalorder %s356, 1
                  %s361 = sphi %s272, %s272
                  %s362 = sphi %s258, %s258
                $region58: #{tpu_custom_call.1} parent=54 // loop_header_branch
                  %359 = sbr.rel (%p357) target = $region62
                $region59: #{tpu_custom_call.1} parent=54 // loop_body
                  _
                $region60: #{tpu_custom_call.1} parent=54 // loop_footer
                  %s360 = sadd.s32 1, %s356
                $region61: #{tpu_custom_call.1} parent=54 // loop_footer_branch
                  %355 = sbr.rel target = $region57
                $region62: #{tpu_custom_call.1} parent=54 // loop_exit
                  _
                %s364 = ssub.s32 16, 1
                loop: start=0, step=1, limit=1
                $region63: #{tpu_custom_call.1} parent=54 // loop_pre_header
                  _
                $region64: #{tpu_custom_call.1} parent=54 // loop_header
                  %s366 = sphi 0, %s370
                  %p367 = scmp.ge.s32.totalorder %s366, 1
                  %s371 = sphi %s272, %s272
                  %s372 = sphi %s258, %s258
                $region65: #{tpu_custom_call.1} parent=54 // loop_header_branch
                  %369 = sbr.rel (%p367) target = $region69
                $region66: #{tpu_custom_call.1} parent=54 // loop_body
                  %v373 = vld [vmem:[%s371] sm:%s364]
                  %374 = vst [vmem:[%s372] sm:%s364] %v373
                  %v375 = vld [vmem:[%s371 + $0x4] sm:%s364]
                  %376 = vst [vmem:[%s372 + $0x4] sm:%s364] %v375
                  %v377 = vld [vmem:[%s371 + $0x8] sm:%s364]
                  %378 = vst [vmem:[%s372 + $0x8] sm:%s364] %v377
                  %v379 = vld [vmem:[%s371 + $0xc] sm:%s364]
                  %380 = vst [vmem:[%s372 + $0xc] sm:%s364] %v379
                  %v381 = vld [vmem:[%s371 + $0x10] sm:%s364]
                  %382 = vst [vmem:[%s372 + $0x10] sm:%s364] %v381
                  %v383 = vld [vmem:[%s371 + $0x14] sm:%s364]
                  %384 = vst [vmem:[%s372 + $0x14] sm:%s364] %v383
                  %v385 = vld [vmem:[%s371 + $0x18] sm:%s364]
                  %386 = vst [vmem:[%s372 + $0x18] sm:%s364] %v385
                  %v387 = vld [vmem:[%s371 + $0x1c] sm:%s364]
                  %388 = vst [vmem:[%s372 + $0x1c] sm:%s364] %v387
                  %v389 = vld [vmem:[%s371 + $0x20] sm:%s364]
                  %390 = vst [vmem:[%s372 + $0x20] sm:%s364] %v389
                  %v391 = vld [vmem:[%s371 + $0x24] sm:%s364]
                  %392 = vst [vmem:[%s372 + $0x24] sm:%s364] %v391
                  %v393 = vld [vmem:[%s371 + $0x28] sm:%s364]
                  %394 = vst [vmem:[%s372 + $0x28] sm:%s364] %v393
                  %v395 = vld [vmem:[%s371 + $0x2c] sm:%s364]
                  %396 = vst [vmem:[%s372 + $0x2c] sm:%s364] %v395
                  %v397 = vld [vmem:[%s371 + $0x30] sm:%s364]
                  %398 = vst [vmem:[%s372 + $0x30] sm:%s364] %v397
                  %v399 = vld [vmem:[%s371 + $0x34] sm:%s364]
                  %400 = vst [vmem:[%s372 + $0x34] sm:%s364] %v399
                  %v401 = vld [vmem:[%s371 + $0x38] sm:%s364]
                  %402 = vst [vmem:[%s372 + $0x38] sm:%s364] %v401
                  %v403 = vld [vmem:[%s371 + $0x3c] sm:%s364]
                  %404 = vst [vmem:[%s372 + $0x3c] sm:%s364] %v403
                  %v405 = vld [vmem:[%s371 + $0x80] sm:%s364]
                  %406 = vst [vmem:[%s372 + $0x40] sm:%s364] %v405
                  %v407 = vld [vmem:[%s371 + $0x84] sm:%s364]
                  %408 = vst [vmem:[%s372 + $0x44] sm:%s364] %v407
                  %v409 = vld [vmem:[%s371 + $0x88] sm:%s364]
                  %410 = vst [vmem:[%s372 + $0x48] sm:%s364] %v409
                  %v411 = vld [vmem:[%s371 + $0x8c] sm:%s364]
                  %412 = vst [vmem:[%s372 + $0x4c] sm:%s364] %v411
                  %v413 = vld [vmem:[%s371 + $0x90] sm:%s364]
                  %414 = vst [vmem:[%s372 + $0x50] sm:%s364] %v413
                  %v415 = vld [vmem:[%s371 + $0x94] sm:%s364]
                  %416 = vst [vmem:[%s372 + $0x54] sm:%s364] %v415
                  %v417 = vld [vmem:[%s371 + $0x98] sm:%s364]
                  %418 = vst [vmem:[%s372 + $0x58] sm:%s364] %v417
                  %v419 = vld [vmem:[%s371 + $0x9c] sm:%s364]
                  %420 = vst [vmem:[%s372 + $0x5c] sm:%s364] %v419
                  %v421 = vld [vmem:[%s371 + $0xa0] sm:%s364]
                  %422 = vst [vmem:[%s372 + $0x60] sm:%s364] %v421
                  %v423 = vld [vmem:[%s371 + $0xa4] sm:%s364]
                  %424 = vst [vmem:[%s372 + $0x64] sm:%s364] %v423
                  %v425 = vld [vmem:[%s371 + $0xa8] sm:%s364]
                  %426 = vst [vmem:[%s372 + $0x68] sm:%s364] %v425
                  %v427 = vld [vmem:[%s371 + $0xac] sm:%s364]
                  %428 = vst [vmem:[%s372 + $0x6c] sm:%s364] %v427
                  %v429 = vld [vmem:[%s371 + $0xb0] sm:%s364]
                  %430 = vst [vmem:[%s372 + $0x70] sm:%s364] %v429
                  %v431 = vld [vmem:[%s371 + $0xb4] sm:%s364]
                  %432 = vst [vmem:[%s372 + $0x74] sm:%s364] %v431
                  %v433 = vld [vmem:[%s371 + $0xb8] sm:%s364]
                  %434 = vst [vmem:[%s372 + $0x78] sm:%s364] %v433
                  %v435 = vld [vmem:[%s371 + $0xbc] sm:%s364]
                  %436 = vst [vmem:[%s372 + $0x7c] sm:%s364] %v435
                $region67: #{tpu_custom_call.1} parent=54 // loop_footer
                  %s370 = sadd.s32 1, %s366
                $region68: #{tpu_custom_call.1} parent=54 // loop_footer_branch
                  %365 = sbr.rel target = $region64
                $region69: #{tpu_custom_call.1} parent=54 // loop_exit
                  _
              $region55: #{tpu_custom_call.1} parent=39 // pred_fallthru
                _
            $region40: #{tpu_custom_call.1} parent=35 // pred_fallthru
              _
            // Predicated region
            $region41: #{tpu_custom_call.1} parent=35 // pred_check
              _
            $region42: #{tpu_custom_call.1} parent=35 // pred_check_branch
              %278 = sbr.rel (0) target = $region44
            $region43: #{tpu_custom_call.1} parent=35 // pred_region
              %s280 = ssub.s32 16, 1
              loop: start=0, step=1, limit=1
              $region45: #{tpu_custom_call.1} parent=43 // loop_pre_header
                _
              $region46: #{tpu_custom_call.1} parent=43 // loop_header
                %s282 = sphi 0, %s286
                %p283 = scmp.ge.s32.totalorder %s282, 1
                %s287 = sphi %s272, %s272
                %s288 = sphi %s258, %s258
              $region47: #{tpu_custom_call.1} parent=43 // loop_header_branch
                %285 = sbr.rel (%p283) target = $region51
              $region48: #{tpu_custom_call.1} parent=43 // loop_body
                %v289 = vld [vmem:[%s287] sm:%s280]
                %290 = vst [vmem:[%s288] sm:%s280] %v289
                %v291 = vld [vmem:[%s287 + $0x4] sm:%s280]
                %292 = vst [vmem:[%s288 + $0x4] sm:%s280] %v291
                %v293 = vld [vmem:[%s287 + $0x8] sm:%s280]
                %294 = vst [vmem:[%s288 + $0x8] sm:%s280] %v293
                %v295 = vld [vmem:[%s287 + $0xc] sm:%s280]
                %296 = vst [vmem:[%s288 + $0xc] sm:%s280] %v295
                %v297 = vld [vmem:[%s287 + $0x10] sm:%s280]
                %298 = vst [vmem:[%s288 + $0x10] sm:%s280] %v297
                %v299 = vld [vmem:[%s287 + $0x14] sm:%s280]
                %300 = vst [vmem:[%s288 + $0x14] sm:%s280] %v299
                %v301 = vld [vmem:[%s287 + $0x18] sm:%s280]
                %302 = vst [vmem:[%s288 + $0x18] sm:%s280] %v301
                %v303 = vld [vmem:[%s287 + $0x1c] sm:%s280]
                %304 = vst [vmem:[%s288 + $0x1c] sm:%s280] %v303
                %v305 = vld [vmem:[%s287 + $0x20] sm:%s280]
                %306 = vst [vmem:[%s288 + $0x20] sm:%s280] %v305
                %v307 = vld [vmem:[%s287 + $0x24] sm:%s280]
                %308 = vst [vmem:[%s288 + $0x24] sm:%s280] %v307
                %v309 = vld [vmem:[%s287 + $0x28] sm:%s280]
                %310 = vst [vmem:[%s288 + $0x28] sm:%s280] %v309
                %v311 = vld [vmem:[%s287 + $0x2c] sm:%s280]
                %312 = vst [vmem:[%s288 + $0x2c] sm:%s280] %v311
                %v313 = vld [vmem:[%s287 + $0x30] sm:%s280]
                %314 = vst [vmem:[%s288 + $0x30] sm:%s280] %v313
                %v315 = vld [vmem:[%s287 + $0x34] sm:%s280]
                %316 = vst [vmem:[%s288 + $0x34] sm:%s280] %v315
                %v317 = vld [vmem:[%s287 + $0x38] sm:%s280]
                %318 = vst [vmem:[%s288 + $0x38] sm:%s280] %v317
                %v319 = vld [vmem:[%s287 + $0x3c] sm:%s280]
                %320 = vst [vmem:[%s288 + $0x3c] sm:%s280] %v319
                %v321 = vld [vmem:[%s287 + $0x80] sm:%s280]
                %322 = vst [vmem:[%s288 + $0x40] sm:%s280] %v321
                %v323 = vld [vmem:[%s287 + $0x84] sm:%s280]
                %324 = vst [vmem:[%s288 + $0x44] sm:%s280] %v323
                %v325 = vld [vmem:[%s287 + $0x88] sm:%s280]
                %326 = vst [vmem:[%s288 + $0x48] sm:%s280] %v325
                %v327 = vld [vmem:[%s287 + $0x8c] sm:%s280]
                %328 = vst [vmem:[%s288 + $0x4c] sm:%s280] %v327
                %v329 = vld [vmem:[%s287 + $0x90] sm:%s280]
                %330 = vst [vmem:[%s288 + $0x50] sm:%s280] %v329
                %v331 = vld [vmem:[%s287 + $0x94] sm:%s280]
                %332 = vst [vmem:[%s288 + $0x54] sm:%s280] %v331
                %v333 = vld [vmem:[%s287 + $0x98] sm:%s280]
                %334 = vst [vmem:[%s288 + $0x58] sm:%s280] %v333
                %v335 = vld [vmem:[%s287 + $0x9c] sm:%s280]
                %336 = vst [vmem:[%s288 + $0x5c] sm:%s280] %v335
                %v337 = vld [vmem:[%s287 + $0xa0] sm:%s280]
                %338 = vst [vmem:[%s288 + $0x60] sm:%s280] %v337
                %v339 = vld [vmem:[%s287 + $0xa4] sm:%s280]
                %340 = vst [vmem:[%s288 + $0x64] sm:%s280] %v339
                %v341 = vld [vmem:[%s287 + $0xa8] sm:%s280]
                %342 = vst [vmem:[%s288 + $0x68] sm:%s280] %v341
                %v343 = vld [vmem:[%s287 + $0xac] sm:%s280]
                %344 = vst [vmem:[%s288 + $0x6c] sm:%s280] %v343
                %v345 = vld [vmem:[%s287 + $0xb0] sm:%s280]
                %346 = vst [vmem:[%s288 + $0x70] sm:%s280] %v345
                %v347 = vld [vmem:[%s287 + $0xb4] sm:%s280]
                %348 = vst [vmem:[%s288 + $0x74] sm:%s280] %v347
                %v349 = vld [vmem:[%s287 + $0xb8] sm:%s280]
                %350 = vst [vmem:[%s288 + $0x78] sm:%s280] %v349
                %v351 = vld [vmem:[%s287 + $0xbc] sm:%s280]
                %352 = vst [vmem:[%s288 + $0x7c] sm:%s280] %v351
              $region49: #{tpu_custom_call.1} parent=43 // loop_footer
                %s286 = sadd.s32 1, %s282
              $region50: #{tpu_custom_call.1} parent=43 // loop_footer_branch
                %281 = sbr.rel target = $region46
              $region51: #{tpu_custom_call.1} parent=43 // loop_exit
                _
            $region44: #{tpu_custom_call.1} parent=35 // pred_fallthru
              _
          $region36: #{tpu_custom_call.1} parent=31 // pred_fallthru
            _
          %437 = vnop
        $region32: #{tpu_custom_call.1} parent=27 // pred_fallthru
          _
        // Predicated region
        $region70: #{tpu_custom_call.1} parent=27 // pred_check
          %p438 = pneg %p120
        $region71: #{tpu_custom_call.1} parent=27 // pred_check_branch
          %440 = sbr.rel (%p438) target = $region73
        $region72: #{tpu_custom_call.1} parent=27 // pred_region
          %s441 = sshra.s32 %s34, 7
          %s442 = sand.u32 %s34, 127
          %s443 = sadd.s32 %s441, %s33
          %s444 = smul.u32 %s443, 128
          %s445 = sshra.s32 %s34, 7
          %s446 = sand.u32 %s34, 127
          %s447 = sadd.s32 %s444, %s446
          %s448 = sld [smem:[#allocation5 + %s447]]
          %p449 = scmp.lt.s32.totalorder %s33, 0
          %s450 = scalar_select %p449, %s33, 0
          %p451 = scmp.lt.s32.totalorder %s448, 1
          %s452 = scalar_select %p451, %s448, 1
          %s453 = smul.addr %s450, 2
          %s454 = sadd.s32 %s452, %s453
          %s455 = smul.addr %s454, 2
          %s456 = scalar_lea.vmem %s4, %s455
          %s457 = sshra.s32 %s34, 7
          %s458 = sand.u32 %s34, 127
          %s459 = sadd.s32 %s457, %s33
          %s460 = smul.u32 %s459, 128
          %s461 = sshra.s32 %s34, 7
          %s462 = sand.u32 %s34, 127
          %s463 = sadd.s32 %s460, %s462
          %s464 = sld [smem:[#allocation5 + %s463]]
        $region73: #{tpu_custom_call.1} parent=27 // pred_fallthru
          _
      $region28: #{tpu_custom_call.1} parent=5 // pred_fallthru
        _
      %p465 = scmp.le.s32.totalorder 1, %s26
      %p466 = scmp.lt.s32.totalorder %s26, 3
      %p467 = pnand %p465, %p466
      %p468 = pneg %p467
      // Predicated region
      $region74: #{tpu_custom_call.1} parent=5 // pred_check
        _
      $region75: #{tpu_custom_call.1} parent=5 // pred_check_branch
        %470 = sbr.rel (%p467) target = $region77
      $region76: #{tpu_custom_call.1} parent=5 // pred_region
        %s471 = ssub.s32 %s26, 1
        %s472 = sand.u32 %s69, 1
        %s473 = sand.u32 %s69, 1
        %s474 = smul.addr %s473, 128
        %s475 = scalar_lea.vmem [#allocation7], %s474
        // Predicated region
        $region78: #{tpu_custom_call.1} parent=76 // pred_check
          %p476 = pneg %p82
        $region79: #{tpu_custom_call.1} parent=76 // pred_check_branch
          %478 = sbr.rel (%p476) target = $region81
        $region80: #{tpu_custom_call.1} parent=76 // pred_region
          _
        $region81: #{tpu_custom_call.1} parent=76 // pred_fallthru
          _
        %s479 = sand.u32 %s69, 1
        %s480 = sand.u32 %s69, 1
        %s481 = smul.addr %s480, 128
        %s482 = scalar_lea.vmem [#allocation7], %s481
        %p483 = pneg %p82
        %p484 = pneg %p79
        %s485 = sshra.s32 %s36, 7
        %s486 = sand.u32 %s36, 127
        %s487 = sadd.s32 %s485, %s35
        %s488 = smul.u32 %s487, 128
        %s489 = sshra.s32 %s36, 7
        %s490 = sand.u32 %s36, 127
        %s491 = sadd.s32 %s488, %s490
        %s492 = sld [smem:[#allocation5 + %s491]]
        %p493 = scmp.lt.s32.totalorder %s35, 0
        %s494 = scalar_select %p493, %s35, 0
        %p495 = scmp.lt.s32.totalorder %s492, 1
        %s496 = scalar_select %p495, %s492, 1
        %s497 = smul.addr %s494, 2
        %s498 = sadd.s32 %s496, %s497
        %s499 = smul.addr %s498, 2
        %s500 = scalar_lea.vmem %s4, %s499
        %p501 = pneg %p126
        %p502 = pneg %p123
        %p503 = scmp.lt.s32.totalorder %s35, 0
        %s504 = scalar_select %p503, %s35, 0
        %s505 = smul.addr %s504, 2
        %s506 = scalar_lea.vmem %s5, %s505
        %p507 = pneg %p152
        %p508 = pneg %p149
        %p509 = pneg %p173
        %p510 = pneg %p170
        %p511 = pneg %p194
        %p512 = pneg %p191
        %p513 = pneg %p220
        %p514 = pneg %p217
        %s515 = sshra.s32 %s36, 7
        %s516 = sand.u32 %s36, 127
        %s517 = sadd.s32 %s515, %s35
        %s518 = smul.u32 %s517, 128
        %s519 = sshra.s32 %s36, 7
        %s520 = sand.u32 %s36, 127
        %s521 = sadd.s32 %s518, %s520
        %s522 = sld [smem:[#allocation5 + %s521]]
        %s523 = smul.u32 2, %s35
        %s524 = smul.u32 16, %s522
        %s525 = sshra.s32 %s36, 7
        %s526 = sand.u32 %s36, 127
        %s527 = sadd.s32 %s525, %s35
        %s528 = smul.u32 %s527, 128
        %s529 = sshra.s32 %s36, 7
        %s530 = sand.u32 %s36, 127
        %s531 = sadd.s32 %s528, %s530
        %s532 = sld [smem:[#allocation5 + %s531]]
        %p533 = scmp.lt.s32.totalorder %s35, 0
        %s534 = scalar_select %p533, %s35, 0
        %p535 = scmp.lt.s32.totalorder %s532, 1
        %s536 = scalar_select %p535, %s532, 1
        %s537 = smul.addr %s534, 2
        %s538 = sadd.s32 %s536, %s537
        %s539 = smul.addr %s538, 2
        %s540 = scalar_lea.vmem %s4, %s539
        %s541 = sshra.s32 %s36, 7
        %s542 = sand.u32 %s36, 127
        %s543 = sadd.s32 %s541, %s35
        %s544 = smul.u32 %s543, 128
        %s545 = sshra.s32 %s36, 7
        %s546 = sand.u32 %s36, 127
        %s547 = sadd.s32 %s544, %s546
        %s548 = sld [smem:[#allocation5 + %s547]]
        %p549 = scmp.lt.s32.totalorder %s35, 0
        %s550 = scalar_select %p549, %s35, 0
        %s551 = smul.addr %s550, 2
        %s552 = scalar_lea.vmem %s5, %s551
        %p553 = scmp.eq.s32.totalorder %s36, 0
        // Predicated region
        $region82: #{tpu_custom_call.1} parent=76 // pred_check
          %p554 = pneg %p553
        $region83: #{tpu_custom_call.1} parent=76 // pred_check_branch
          %556 = sbr.rel (%p554) target = $region85
        $region84: #{tpu_custom_call.1} parent=76 // pred_region
          %vm557 = vcmask 254976
          %558 = vst.msk [vmem:[#allocation2] sm:$0x3] %vm557, 0.0
        $region85: #{tpu_custom_call.1} parent=76 // pred_fallthru
          _
        %s559 = sld [smem:[#allocation6 + %s35]]
        %p560 = scmp.lt.s32.totalorder %s36, %s559
        // Predicated region
        $region86: #{tpu_custom_call.1} parent=76 // pred_check
          %p561 = pneg %p560
        $region87: #{tpu_custom_call.1} parent=76 // pred_check_branch
          %563 = sbr.rel (%p561) target = $region89
        $region88: #{tpu_custom_call.1} parent=76 // pred_region
          %v564 = vld [vmem:[%s475] sm:$0xf]
          %v565 = vld [vmem:[%s475 + $0x4] sm:$0xf]
          %v566 = vld [vmem:[%s475 + $0x8] sm:$0xf]
          %v567 = vld [vmem:[%s475 + $0xc] sm:$0xf]
          %v568 = vld [vmem:[%s475 + $0x10] sm:$0xf]
          %v569 = vld [vmem:[%s475 + $0x14] sm:$0xf]
          %v570 = vld [vmem:[%s475 + $0x18] sm:$0xf]
          %v571 = vld [vmem:[%s475 + $0x1c] sm:$0xf]
          %v572 = vld [vmem:[%s475 + $0x20] sm:$0xf]
          %v573 = vld [vmem:[%s475 + $0x24] sm:$0xf]
          %v574 = vld [vmem:[%s475 + $0x28] sm:$0xf]
          %v575 = vld [vmem:[%s475 + $0x2c] sm:$0xf]
          %v576 = vld [vmem:[%s475 + $0x30] sm:$0xf]
          %v577 = vld [vmem:[%s475 + $0x34] sm:$0xf]
          %v578 = vld [vmem:[%s475 + $0x38] sm:$0xf]
          %v579 = vld [vmem:[%s475 + $0x3c] sm:$0xf]
          %v580 = vld [vmem:[%s475 + $0x40] sm:$0xf]
          %v581 = vld [vmem:[%s475 + $0x44] sm:$0xf]
          %v582 = vld [vmem:[%s475 + $0x48] sm:$0xf]
          %v583 = vld [vmem:[%s475 + $0x4c] sm:$0xf]
          %v584 = vld [vmem:[%s475 + $0x50] sm:$0xf]
          %v585 = vld [vmem:[%s475 + $0x54] sm:$0xf]
          %v586 = vld [vmem:[%s475 + $0x58] sm:$0xf]
          %v587 = vld [vmem:[%s475 + $0x5c] sm:$0xf]
          %v588 = vld [vmem:[%s475 + $0x60] sm:$0xf]
          %v589 = vld [vmem:[%s475 + $0x64] sm:$0xf]
          %v590 = vld [vmem:[%s475 + $0x68] sm:$0xf]
          %v591 = vld [vmem:[%s475 + $0x6c] sm:$0xf]
          %v592 = vld [vmem:[%s475 + $0x70] sm:$0xf]
          %v593 = vld [vmem:[%s475 + $0x74] sm:$0xf]
          %v594 = vld [vmem:[%s475 + $0x78] sm:$0xf]
          %v595 = vld [vmem:[%s475 + $0x7c] sm:$0xf]
          %v596 = vunpack.c.l.bf16 %v564
          %v597 = vunpack.c.l.bf16 %v565
          %v598 = vunpack.c.l.bf16 %v566
          %v599 = vunpack.c.l.bf16 %v567
          %v600 = vunpack.c.l.bf16 %v568
          %v601 = vunpack.c.l.bf16 %v569
          %v602 = vunpack.c.l.bf16 %v570
          %v603 = vunpack.c.l.bf16 %v571
          %v604 = vunpack.c.l.bf16 %v572
          %v605 = vunpack.c.l.bf16 %v573
          %v606 = vunpack.c.l.bf16 %v574
          %v607 = vunpack.c.l.bf16 %v575
          %v608 = vunpack.c.l.bf16 %v576
          %v609 = vunpack.c.l.bf16 %v577
          %v610 = vunpack.c.l.bf16 %v578
          %v611 = vunpack.c.l.bf16 %v579
          %v612 = vunpack.c.l.bf16 %v580
          %v613 = vunpack.c.l.bf16 %v581
          %v614 = vunpack.c.l.bf16 %v582
          %v615 = vunpack.c.l.bf16 %v583
          %v616 = vunpack.c.l.bf16 %v584
          %v617 = vunpack.c.l.bf16 %v585
          %v618 = vunpack.c.l.bf16 %v586
          %v619 = vunpack.c.l.bf16 %v587
          %v620 = vunpack.c.l.bf16 %v588
          %v621 = vunpack.c.l.bf16 %v589
          %v622 = vunpack.c.l.bf16 %v590
          %v623 = vunpack.c.l.bf16 %v591
          %v624 = vunpack.c.l.bf16 %v592
          %v625 = vunpack.c.l.bf16 %v593
          %v626 = vunpack.c.l.bf16 %v594
          %v627 = vunpack.c.l.bf16 %v595
          %v628 = vmax.f32 %v596, 1e-06
          %v629 = vmax.f32 %v597, 1e-06
          %v630 = vmax.f32 %v598, 1e-06
          %v631 = vmax.f32 %v599, 1e-06
          %v632 = vmax.f32 %v600, 1e-06
          %v633 = vmax.f32 %v601, 1e-06
          %v634 = vmax.f32 %v602, 1e-06
          %v635 = vmax.f32 %v603, 1e-06
          %v636 = vmax.f32 %v604, 1e-06
          %v637 = vmax.f32 %v605, 1e-06
          %v638 = vmax.f32 %v606, 1e-06
          %v639 = vmax.f32 %v607, 1e-06
          %v640 = vmax.f32 %v608, 1e-06
          %v641 = vmax.f32 %v609, 1e-06
          %v642 = vmax.f32 %v610, 1e-06
          %v643 = vmax.f32 %v611, 1e-06
          %v644 = vmax.f32 %v612, 1e-06
          %v645 = vmax.f32 %v613, 1e-06
          %v646 = vmax.f32 %v614, 1e-06
          %v647 = vmax.f32 %v615, 1e-06
          %v648 = vmax.f32 %v616, 1e-06
          %v649 = vmax.f32 %v617, 1e-06
          %v650 = vmax.f32 %v618, 1e-06
          %v651 = vmax.f32 %v619, 1e-06
          %v652 = vmax.f32 %v620, 1e-06
          %v653 = vmax.f32 %v621, 1e-06
          %v654 = vmax.f32 %v622, 1e-06
          %v655 = vmax.f32 %v623, 1e-06
          %v656 = vmax.f32 %v624, 1e-06
          %v657 = vmax.f32 %v625, 1e-06
          %v658 = vmax.f32 %v626, 1e-06
          %v659 = vmax.f32 %v627, 1e-06
          %v660 = vmul.f32 %v628, %v628
          %v661 = vmul.f32 %v629, %v629
          %v662 = vmul.f32 %v630, %v630
          %v663 = vmul.f32 %v631, %v631
          %v664 = vmul.f32 %v632, %v632
          %v665 = vmul.f32 %v633, %v633
          %v666 = vmul.f32 %v634, %v634
          %v667 = vmul.f32 %v635, %v635
          %v668 = vmul.f32 %v636, %v636
          %v669 = vmul.f32 %v637, %v637
          %v670 = vmul.f32 %v638, %v638
          %v671 = vmul.f32 %v639, %v639
          %v672 = vmul.f32 %v640, %v640
          %v673 = vmul.f32 %v641, %v641
          %v674 = vmul.f32 %v642, %v642
          %v675 = vmul.f32 %v643, %v643
          %v676 = vmul.f32 %v644, %v644
          %v677 = vmul.f32 %v645, %v645
          %v678 = vmul.f32 %v646, %v646
          %v679 = vmul.f32 %v647, %v647
          %v680 = vmul.f32 %v648, %v648
          %v681 = vmul.f32 %v649, %v649
          %v682 = vmul.f32 %v650, %v650
          %v683 = vmul.f32 %v651, %v651
          %v684 = vmul.f32 %v652, %v652
          %v685 = vmul.f32 %v653, %v653
          %v686 = vmul.f32 %v654, %v654
          %v687 = vmul.f32 %v655, %v655
          %v688 = vmul.f32 %v656, %v656
          %v689 = vmul.f32 %v657, %v657
          %v690 = vmul.f32 %v658, %v658
          %v691 = vmul.f32 %v659, %v659
          %v692 = vmul.f32 %v660, %v628
          %v693 = vmul.f32 %v661, %v629
          %v694 = vmul.f32 %v662, %v630
          %v695 = vmul.f32 %v663, %v631
          %v696 = vmul.f32 %v664, %v632
          %v697 = vmul.f32 %v665, %v633
          %v698 = vmul.f32 %v666, %v634
          %v699 = vmul.f32 %v667, %v635
          %v700 = vmul.f32 %v668, %v636
          %v701 = vmul.f32 %v669, %v637
          %v702 = vmul.f32 %v670, %v638
          %v703 = vmul.f32 %v671, %v639
          %v704 = vmul.f32 %v672, %v640
          %v705 = vmul.f32 %v673, %v641
          %v706 = vmul.f32 %v674, %v642
          %v707 = vmul.f32 %v675, %v643
          %v708 = vmul.f32 %v676, %v644
          %v709 = vmul.f32 %v677, %v645
          %v710 = vmul.f32 %v678, %v646
          %v711 = vmul.f32 %v679, %v647
          %v712 = vmul.f32 %v680, %v648
          %v713 = vmul.f32 %v681, %v649
          %v714 = vmul.f32 %v682, %v650
          %v715 = vmul.f32 %v683, %v651
          %v716 = vmul.f32 %v684, %v652
          %v717 = vmul.f32 %v685, %v653
          %v718 = vmul.f32 %v686, %v654
          %v719 = vmul.f32 %v687, %v655
          %v720 = vmul.f32 %v688, %v656
          %v721 = vmul.f32 %v689, %v657
          %v722 = vmul.f32 %v690, %v658
          %v723 = vmul.f32 %v691, %v659
          %v724 = vld [vmem:[%s540] sm:$0x3]
          %v725 = vld [vmem:[#allocation2] sm:$0x1]
          %726 = vmatprep.subr.mxu0 0.0
          %727 = vmatpush1.msra.mxu0 %v707
          %728 = vmatprep.subr.mxu0 0.0
          %729 = vmatpush1.msra.mxu0 %v706
          %730 = vmatprep.subr.mxu0 0.0
          %731 = vmatpush1.msra.mxu0 %v705
          %732 = vmatprep.subr.mxu0 0.0
          %733 = vmatpush1.msra.mxu0 %v704
          %734 = vmatprep.subr.mxu0 0.0
          %735 = vmatpush1.msra.mxu0 %v703
          %736 = vmatprep.subr.mxu0 0.0
          %737 = vmatpush1.msra.mxu0 %v702
          %738 = vmatprep.subr.mxu0 0.0
          %739 = vmatpush1.msra.mxu0 %v701
          %740 = vmatprep.subr.mxu0 0.0
          %741 = vmatpush1.msra.mxu0 %v700
          %742 = vmatprep.subr.mxu0 0.0
          %743 = vmatpush1.msra.mxu0 %v699
          %744 = vmatprep.subr.mxu0 0.0
          %745 = vmatpush1.msra.mxu0 %v698
          %746 = vmatprep.subr.mxu0 0.0
          %747 = vmatpush1.msra.mxu0 %v697
          %748 = vmatprep.subr.mxu0 0.0
          %749 = vmatpush1.msra.mxu0 %v696
          %750 = vmatprep.subr.mxu0 0.0
          %751 = vmatpush1.msra.mxu0 %v695
          %752 = vmatprep.subr.mxu0 0.0
          %753 = vmatpush1.msra.mxu0 %v694
          %754 = vmatprep.subr.mxu0 0.0
          %755 = vmatpush1.msra.mxu0 %v693
          %756 = vmatprep.subr.mxu0 0.0
          %757 = vmatpush1.msra.mxu0 %v692
          %758 = vmatprep.subr.mxu0 0.0
          %759 = vmatpush2.msra.mxu0 0.0
          %760 = vmatprep.subr.mxu0 0.0
          %761 = vmatpush2.msra.mxu0 0.0
          %762 = vmatprep.subr.mxu0 0.0
          %763 = vmatpush2.msra.mxu0 0.0
          %764 = vmatprep.subr.mxu0 0.0
          %765 = vmatpush2.msra.mxu0 0.0
          %766 = vmatprep.subr.mxu0 0.0
          %767 = vmatpush2.msra.mxu0 0.0
          %768 = vmatprep.subr.mxu0 0.0
          %769 = vmatpush2.msra.mxu0 0.0
          %770 = vmatprep.subr.mxu0 0.0
          %771 = vmatpush2.msra.mxu0 0.0
          %772 = vmatprep.subr.mxu0 0.0
          %773 = vmatpush2.msra.mxu0 0.0
          %774 = vmatprep.subr.mxu0 0.0
          %775 = vmatpush2.msra.mxu0 0.0
          %776 = vmatprep.subr.mxu0 0.0
          %777 = vmatpush2.msra.mxu0 0.0
          %778 = vmatprep.subr.mxu0 0.0
          %779 = vmatpush2.msra.mxu0 0.0
          %780 = vmatprep.subr.mxu0 0.0
          %781 = vmatpush2.msra.mxu0 0.0
          %782 = vmatprep.subr.mxu0 0.0
          %783 = vmatpush2.msra.mxu0 0.0
          %784 = vmatprep.subr.mxu0 0.0
          %785 = vmatpush2.msra.mxu0 0.0
          %786 = vmatprep.subr.mxu0 0.0
          %787 = vmatpush2.msra.mxu0 0.0
          %788 = vmatprep.subr.mxu0 0.0
          %789 = vmatpush2.msra.mxu0 0.0
          %790 = vmatprep.mubr.f32.mxu0 0.0
          %791 = vmatmul.mubr.f32.gmra.mxu0 %v724
          %v792 = vpop.f32.mrf.mxu0
          %v793 = vadd.f32 0.0, %v792
          %v794 = vpop.f32.mrf.mxu0
          %795 = vdwg.mxu0
          %v796 = vadd.f32 %v725, %v793
          %vm797 = vcmask 253952
          %798 = vst.msk [vmem:[#allocation2] sm:$0x1] %vm797, %v796
          %v799 = vld [vmem:[#allocation2 + $0x1] sm:$0x1]
          %v801 = vrot.slane %v724, 1
          %803 = vmatprep.subr.mxu0 0.0
          %804 = vmatpush1.msra.mxu0 %v723
          %805 = vmatprep.subr.mxu0 0.0
          %806 = vmatpush1.msra.mxu0 %v722
          %807 = vmatprep.subr.mxu0 0.0
          %808 = vmatpush1.msra.mxu0 %v721
          %809 = vmatprep.subr.mxu0 0.0
          %810 = vmatpush1.msra.mxu0 %v720
          %811 = vmatprep.subr.mxu0 0.0
          %812 = vmatpush1.msra.mxu0 %v719
          %813 = vmatprep.subr.mxu0 0.0
          %814 = vmatpush1.msra.mxu0 %v718
          %815 = vmatprep.subr.mxu0 0.0
          %816 = vmatpush1.msra.mxu0 %v717
          %817 = vmatprep.subr.mxu0 0.0
          %818 = vmatpush1.msra.mxu0 %v716
          %819 = vmatprep.subr.mxu0 0.0
          %820 = vmatpush1.msra.mxu0 %v715
          %821 = vmatprep.subr.mxu0 0.0
          %822 = vmatpush1.msra.mxu0 %v714
          %823 = vmatprep.subr.mxu0 0.0
          %824 = vmatpush1.msra.mxu0 %v713
          %825 = vmatprep.subr.mxu0 0.0
          %826 = vmatpush1.msra.mxu0 %v712
          %827 = vmatprep.subr.mxu0 0.0
          %828 = vmatpush1.msra.mxu0 %v711
          %829 = vmatprep.subr.mxu0 0.0
          %830 = vmatpush1.msra.mxu0 %v710
          %831 = vmatprep.subr.mxu0 0.0
          %832 = vmatpush1.msra.mxu0 %v709
          %833 = vmatprep.subr.mxu0 0.0
          %834 = vmatpush1.msra.mxu0 %v708
          %835 = vmatprep.subr.mxu0 0.0
          %836 = vmatpush2.msra.mxu0 0.0
          %837 = vmatprep.subr.mxu0 0.0
          %838 = vmatpush2.msra.mxu0 0.0
          %839 = vmatprep.subr.mxu0 0.0
          %840 = vmatpush2.msra.mxu0 0.0
          %841 = vmatprep.subr.mxu0 0.0
          %842 = vmatpush2.msra.mxu0 0.0
          %843 = vmatprep.subr.mxu0 0.0
          %844 = vmatpush2.msra.mxu0 0.0
          %845 = vmatprep.subr.mxu0 0.0
          %846 = vmatpush2.msra.mxu0 0.0
          %847 = vmatprep.subr.mxu0 0.0
          %848 = vmatpush2.msra.mxu0 0.0
          %849 = vmatprep.subr.mxu0 0.0
          %850 = vmatpush2.msra.mxu0 0.0
          %851 = vmatprep.subr.mxu0 0.0
          %852 = vmatpush2.msra.mxu0 0.0
          %853 = vmatprep.subr.mxu0 0.0
          %854 = vmatpush2.msra.mxu0 0.0
          %855 = vmatprep.subr.mxu0 0.0
          %856 = vmatpush2.msra.mxu0 0.0
          %857 = vmatprep.subr.mxu0 0.0
          %858 = vmatpush2.msra.mxu0 0.0
          %859 = vmatprep.subr.mxu0 0.0
          %860 = vmatpush2.msra.mxu0 0.0
          %861 = vmatprep.subr.mxu0 0.0
          %862 = vmatpush2.msra.mxu0 0.0
          %863 = vmatprep.subr.mxu0 0.0
          %864 = vmatpush2.msra.mxu0 0.0
          %865 = vmatprep.subr.mxu0 0.0
          %866 = vmatpush2.msra.mxu0 0.0
          %867 = vmatprep.mubr.f32.mxu0 0.0
          %868 = vmatmul.mubr.f32.gmra.mxu0 %v801
          %v869 = vpop.f32.mrf.mxu0
          %v870 = vadd.f32 0.0, %v869
          %v871 = vpop.f32.mrf.mxu0
          %872 = vdwg.mxu0
          %v873 = vadd.f32 %v799, %v870
          %874 = vst.msk [vmem:[#allocation2 + $0x1] sm:$0x1] %vm797, %v873
        $region89: #{tpu_custom_call.1} parent=76 // pred_fallthru
          _
        %p875 = scmp.eq.s32.totalorder %s36, 1
        // Predicated region
        $region90: #{tpu_custom_call.1} parent=76 // pred_check
          %p876 = pneg %p875
        $region91: #{tpu_custom_call.1} parent=76 // pred_check_branch
          %878 = sbr.rel (%p876) target = $region93
        $region92: #{tpu_custom_call.1} parent=76 // pred_region
          %v879 = vld [vmem:[#allocation2] sm:$0x3]
          %v880 = vld [vmem:[%s552] sm:$0x3]
          %882 = vset.pattern.permute.xlu0 0
          %883 = vperm.xlu0 %882, %v880
          %v884 = vpop.permute.xlu0 %883
          %v886 = vmul.f32 %v879, %v884
          %vm887 = vcmp.gt.f32.partialorder %v886, 0.0
          %v888 = vmax.f32 %v886, 1e-30
          %v889 = vlog2.pop %v888
          %v890 = vmul.f32 %v889, 0.6931472
          %v891 = vmul.f32 %v890, 0.33333334
          %v892 = vmul.f32 %v891, 1.442695
          %v893 = vpow.pop %v892
          %v894 = vsel %vm887, %v893, 0.0
          %v895 = vld [vmem:[%s6] sm:$0xff]
          %v896 = vld [vmem:[%s6 + $0x8] sm:$0xff]
          %v897 = vld [vmem:[%s6 + $0x10] sm:$0xff]
          %v898 = vld [vmem:[%s6 + $0x18] sm:$0xff]
          %v899 = vld [vmem:[%s7] sm:$0x1]
          %v901 = vlaneseq
          %v902 = vshrl.u32 %v901, 7
          %v903 = vsub.s32 0, %v902
          %v904 = vrot.slane %v899, %v903
          %vm906 = vcmask 261120
          %v908 = vsel %vm906, %v894, 0
          %910 = vmatprep.subr.mxu0 0.0
          %911 = vmatpush1.msra.mxu0 0.0
          %912 = vmatprep.subr.mxu0 0.0
          %913 = vmatpush1.msra.mxu0 0.0
          %914 = vmatprep.subr.mxu0 0.0
          %915 = vmatpush1.msra.mxu0 0.0
          %916 = vmatprep.subr.mxu0 0.0
          %917 = vmatpush1.msra.mxu0 0.0
          %918 = vmatprep.subr.mxu0 0.0
          %919 = vmatpush1.msra.mxu0 0.0
          %920 = vmatprep.subr.mxu0 0.0
          %921 = vmatpush1.msra.mxu0 0.0
          %922 = vmatprep.subr.mxu0 0.0
          %923 = vmatpush1.msra.mxu0 0.0
          %924 = vmatprep.subr.mxu0 0.0
          %925 = vmatpush1.msra.mxu0 0.0
          %926 = vmatprep.subr.mxu0 0.0
          %927 = vmatpush1.msra.mxu0 0.0
          %928 = vmatprep.subr.mxu0 0.0
          %929 = vmatpush1.msra.mxu0 0.0
          %930 = vmatprep.subr.mxu0 0.0
          %931 = vmatpush1.msra.mxu0 0.0
          %932 = vmatprep.subr.mxu0 0.0
          %933 = vmatpush1.msra.mxu0 0.0
          %934 = vmatprep.subr.mxu0 0.0
          %935 = vmatpush1.msra.mxu0 %v898
          %936 = vmatprep.subr.mxu0 0.0
          %937 = vmatpush1.msra.mxu0 %v897
          %938 = vmatprep.subr.mxu0 0.0
          %939 = vmatpush1.msra.mxu0 %v896
          %940 = vmatprep.subr.mxu0 0.0
          %941 = vmatpush1.msra.mxu0 %v895
          %942 = vmatprep.subr.mxu0 0.0
          %943 = vmatpush2.msra.mxu0 0.0
          %944 = vmatprep.subr.mxu0 0.0
          %945 = vmatpush2.msra.mxu0 0.0
          %946 = vmatprep.subr.mxu0 0.0
          %947 = vmatpush2.msra.mxu0 0.0
          %948 = vmatprep.subr.mxu0 0.0
          %949 = vmatpush2.msra.mxu0 0.0
          %950 = vmatprep.subr.mxu0 0.0
          %951 = vmatpush2.msra.mxu0 0.0
          %952 = vmatprep.subr.mxu0 0.0
          %953 = vmatpush2.msra.mxu0 0.0
          %954 = vmatprep.subr.mxu0 0.0
          %955 = vmatpush2.msra.mxu0 0.0
          %956 = vmatprep.subr.mxu0 0.0
          %957 = vmatpush2.msra.mxu0 0.0
          %958 = vmatprep.subr.mxu0 0.0
          %959 = vmatpush2.msra.mxu0 0.0
          %960 = vmatprep.subr.mxu0 0.0
          %961 = vmatpush2.msra.mxu0 0.0
          %962 = vmatprep.subr.mxu0 0.0
          %963 = vmatpush2.msra.mxu0 0.0
          %964 = vmatprep.subr.mxu0 0.0
          %965 = vmatpush2.msra.mxu0 0.0
          %966 = vmatprep.subr.mxu0 0.0
          %967 = vmatpush2.msra.mxu0 0.0
          %968 = vmatprep.subr.mxu0 0.0
          %969 = vmatpush2.msra.mxu0 0.0
          %970 = vmatprep.subr.mxu0 0.0
          %971 = vmatpush2.msra.mxu0 0.0
          %972 = vmatprep.subr.mxu0 0.0
          %973 = vmatpush2.msra.mxu0 0.0
          %974 = vmatprep.mubr.f32.mxu0 0.0
          %975 = vmatmul.mubr.f32.gmra.mxu0 %v908
          %v976 = vpop.f32.mrf.mxu0
          %v977 = vadd.f32 %v904, %v976
          %v978 = vpop.f32.mrf.mxu0
          %979 = vdwg.mxu0
          %980 = vst [vmem:[#allocation8] sm:$0x3] %v977
        $region93: #{tpu_custom_call.1} parent=76 // pred_fallthru
          _
        // Predicated region
        $region94: #{tpu_custom_call.1} parent=76 // pred_check
          %p981 = pneg %p217
        $region95: #{tpu_custom_call.1} parent=76 // pred_check_branch
          %983 = sbr.rel (%p981) target = $region97
        $region96: #{tpu_custom_call.1} parent=76 // pred_region
          %s985 = ssub.s32 32, 32
          %986 = vsyncadd [#allocation9], %s985
          %s987 = smul.addr %s35, 32
          %s988 = scalar_lea.hbm %s8, %s987
          %s990 = sshll.u32 [#allocation8], 4
          %s991 = int_to_ptr.vmem [resolvable:$true] %s990
          %993 = dma.vmem_to_hbm [thread:$0]  %s991, 32, %s988, [#allocation9]
        $region97: #{tpu_custom_call.1} parent=76 // pred_fallthru
          _
        // Predicated region
        $region98: #{tpu_custom_call.1} parent=76 // pred_check
          %p994 = pneg %p217
        $region99: #{tpu_custom_call.1} parent=76 // pred_check_branch
          %996 = sbr.rel (%p994) target = $region101
        $region100: #{tpu_custom_call.1} parent=76 // pred_region
          %997 = dma.done [#allocation9], 32
        $region101: #{tpu_custom_call.1} parent=76 // pred_fallthru
          _
      $region77: #{tpu_custom_call.1} parent=5 // pred_fallthru
        _
      %p998 = scmp.le.s32.totalorder 2, %s26
      // Predicated region
      $region102: #{tpu_custom_call.1} parent=5 // pred_check
        %p999 = pneg %p998
      $region103: #{tpu_custom_call.1} parent=5 // pred_check_branch
        %1001 = sbr.rel (%p999) target = $region105
      $region104: #{tpu_custom_call.1} parent=5 // pred_region
        %s1002 = ssub.s32 %s26, 2
      $region105: #{tpu_custom_call.1} parent=5 // pred_fallthru
        _
    $region6: #{tpu_custom_call.1} parent=1 // loop_footer
      %s30 = sadd.s32 1, %s26
    $region7: #{tpu_custom_call.1} parent=1 // loop_footer_branch
      %25 = sbr.rel target = $region3
    $region8: #{tpu_custom_call.1} parent=1 // loop_exit
      _
    %1003 = vsyncpa [#allocation9], 1
    %s1004 = scalar_lea.sflag [#allocation9], 1
    %1005 = vsyncpa %s1004, 1

</llo_original>
